<compile_context>
chip_gen: v6e
topology: v6e:2x2x1
jax: 0.10.0
libtpu: 0.0.40
codegen_flags: <defaults>
</compile_context>

<pallas_src>
import jax
import jax.numpy as jnp
from jax.experimental import pallas as pl
from jax.experimental.pallas import tpu as pltpu


def _cdiv(a, b):
    return -(-a // b)


def _round_up(x, m):
    return _cdiv(x, m) * m


def _node_apply_kernel(x_ref, w_ref, o_ref):
    # x_ref: [tile_n, in_dim]  w_ref: [in_dim, out_dim]  o_ref: [tile_n, out_dim]
    o_ref[...] = jnp.dot(
        x_ref[...], w_ref[...], preferred_element_type=jnp.float32
    ).astype(o_ref.dtype)


def _pick_row_tile(n_rows, in_dim, out_dim, in_isize, out_isize):
    """Largest row tile whose double-buffered working set fits the VMEM budget,
    then balanced into >= 2 grid steps (when enough rows) for v7x megacore."""
    sublane = 32 // in_isize            # f32 -> 8, bf16 -> 16, int8/fp8 -> 32
    budget = 24 * 1024 * 1024           # working-set budget; vmem_limit_bytes
                                        # below is raised to cover it on v5e.
    w_bytes = 2 * in_dim * out_dim * in_isize                   # resident weight
    per_row = 2 * in_dim * in_isize + 2 * out_dim * out_isize   # dbl-buffered rows
    max_tile = max(sublane, (budget - w_bytes) // per_row)
    max_tile = max(sublane, (max_tile // sublane) * sublane)

    # Keep at least 2 roughly balanced grid steps when there is enough work so
    # the "parallel" grid axis feeds both v7x TensorCores.
    min_steps = 2 if n_rows >= 2 * sublane else 1
    steps = max(min_steps, _cdiv(n_rows, max_tile))
    tile = _round_up(_cdiv(n_rows, steps), sublane)
    if tile >= 256:                     # MXU M-dim cadence on v6e/v7x
        tile = _round_up(tile, 256)
    return max(sublane, min(max_tile, tile))


@jax.jit
def node_apply(n_f, w_t):
    """GATConv nodeApplyModule forward: wh = n_f @ W.T.

    n_f: [N, in_dim] node features.
    w_t: [in_dim, out_dim] — the torch Linear weight pre-transposed once at
         parameter-setup time. Pass [in_dim, H*out_dim] to fuse H attention
         heads into a single lane-dense call (output last dim >= 128).
    Returns wh: [N, out_dim].
    """
    N, in_dim = n_f.shape
    assert w_t.shape[0] == in_dim
    out_dim = w_t.shape[1]
    out_dtype = n_f.dtype

    # Features stay in their stored dtype (store bf16 upstream to actually
    # halve HBM traffic); only the tiny weight is cast to match.
    w_t = w_t.astype(n_f.dtype)

    in_isize = jnp.dtype(n_f.dtype).itemsize
    out_isize = jnp.dtype(out_dtype).itemsize
    tile = _pick_row_tile(N, in_dim, out_dim, in_isize, out_isize)
    num_tiles = _cdiv(N, tile)

    cost = pl.CostEstimate(
        flops=2 * N * in_dim * out_dim,
        transcendentals=0,
        bytes_accessed=(N * in_dim * in_isize
                        + in_dim * out_dim * in_isize
                        + N * out_dim * out_isize),
    )

    return pl.pallas_call(
        _node_apply_kernel,
        out_shape=jax.ShapeDtypeStruct((N, out_dim), out_dtype),
        grid_spec=pltpu.PrefetchScalarGridSpec(
            num_scalar_prefetch=0,
            grid=(num_tiles,),
            in_specs=[
                pl.BlockSpec((tile, in_dim), lambda i: (i, 0)),
                pl.BlockSpec((in_dim, out_dim), lambda i: (0, 0)),
            ],
            out_specs=pl.BlockSpec((tile, out_dim), lambda i: (i, 0)),
        ),
        compiler_params=pltpu.CompilerParams(
            dimension_semantics=("parallel",),
            vmem_limit_bytes=32 * 1024 * 1024,
        ),
        cost_estimate=cost,
    )(n_f, w_t)


def xavier_normal(key, out_dim, in_dim, gain):
    std = gain * (2.0 / (in_dim + out_dim)) ** 0.5
    return std * jax.random.normal(key, (out_dim, in_dim), dtype=jnp.float32)


if __name__ == "__main__":
    # N deliberately NOT a tile multiple to exercise Pallas ragged boundary
    # blocks (no wrapper pad / slice anymore).
    N, in_dim, out_dim = 300, 64, 32

    key = jax.random.PRNGKey(0)
    k_x, k_w = jax.random.split(key)
    n_f = jax.random.normal(k_x, (N, in_dim), dtype=jnp.float32)

    # Deterministic xavier_normal_ with gain = calculate_gain('relu') = sqrt(2).
    gain = 2.0 ** 0.5
    weight = xavier_normal(k_w, out_dim, in_dim, gain)  # torch layout [out_dim, in_dim]
    w_t = weight.T  # transpose hoisted to parameter-setup time (done once)

    # TODO(synk): dropout branch (dropout>0) not implemented; default dropout=0.
    wh = node_apply(n_f, w_t)
    jax.block_until_ready(wh)

    # Reference check (plain JAX) for the forward semantics — also verifies the
    # ragged boundary-block path (garbage rows only hit dropped OOB outputs).
    ref = n_f @ weight.T
    assert wh.shape == (N, out_dim)
    assert jnp.allclose(wh, ref, atol=1e-4, rtol=1e-4)

    print("KERNEL_OK")
</pallas_src>

<mosaic_0001>
module attributes {stable_mosaic.version = 11 : i64} {
  func.func @_node_apply_kernel(%arg0: i32, %arg1: memref<152x64xf32, #tpu.memory_space<vmem>>, %arg2: memref<64x32xf32, #tpu.memory_space<vmem>>, %arg3: memref<152x32xf32, #tpu.memory_space<vmem>>) attributes {dimension_semantics = [#tpu.dimension_semantics<parallel>], iteration_bounds = array<i64: 2>, scalar_prefetch = 0 : i64, scratch_operands = 0 : i64, tpu.core_type = #tpu.core_type<tc>, window_params = [{transform_indices = @transform_0, window_bounds = array<i64: 152, 64>}, {pipeline_mode = #tpu.pipeline_mode<synchronous>, transform_indices = @transform_1, window_bounds = array<i64: 64, 32>}, {transform_indices = @transform_2, window_bounds = array<i64: 152, 32>}]} {
    %c0 = arith.constant 0 : index
    %c0_0 = arith.constant 0 : index
    %0 = vector.load %arg1[%c0, %c0_0] : memref<152x64xf32, #tpu.memory_space<vmem>>, vector<152x64xf32>
    %c0_1 = arith.constant 0 : index
    %c0_2 = arith.constant 0 : index
    %1 = vector.load %arg2[%c0_1, %c0_2] : memref<64x32xf32, #tpu.memory_space<vmem>>, vector<64x32xf32>
    %cst = arith.constant dense<0.000000e+00> : vector<152x32xf32>
    %2 = tpu.matmul %0, %1, %cst {dimension_numbers = #tpu.dot_dimension_numbers<[1], [0], [0], [1], [0, 0, 1, 1], [], []>} : vector<152x64xf32>, vector<64x32xf32>, vector<152x32xf32> -> vector<152x32xf32>
    %c0_3 = arith.constant 0 : index
    %c0_4 = arith.constant 0 : index
    %3 = vector.load %arg3[%c0_3, %c0_4] : memref<152x32xf32, #tpu.memory_space<vmem>>, vector<152x32xf32>
    tpu.vector_store %arg3[%c0_3, %c0_4], %2 {strides = array<i32>} : memref<152x32xf32, #tpu.memory_space<vmem>>, vector<152x32xf32>,
    return
  }
  func.func @transform_0(%arg0: i32) -> (i32, i32) {
    %c0_i32 = arith.constant 0 : i32
    %c0_i32_0 = arith.constant 0 : i32
    return %arg0, %c0_i32 : i32, i32
  }
  func.func @transform_1(%arg0: i32) -> (i32, i32) {
    %c0_i32 = arith.constant 0 : i32
    %c0_i32_0 = arith.constant 0 : i32
    %c0_i32_1 = arith.constant 0 : i32
    return %c0_i32, %c0_i32_0 : i32, i32
  }
  func.func @transform_2(%arg0: i32) -> (i32, i32) {
    %c0_i32 = arith.constant 0 : i32
    %c0_i32_0 = arith.constant 0 : i32
    return %arg0, %c0_i32 : i32, i32
  }
}

</mosaic_0001>

<llo_original>
// kernel: node_apply.1
$region0: #{node_apply.1}
  #allocation0 [shape = 'u32[]', space=smem, size = 0x4, offset = 0x4, fixed_abs, tag = 'smem constant byte address 0x4 - core index']
  #allocation1 [shape = 'u32[144,128]{1,0:T(1,128)}', space=vmem, size = 0x12000, scoped, tag = 'internal scratch']
  %s0 = inlined_call_operand.vmem [shape: f32[300,64], index: 0, kind: input, shape index: {}]
  %s1 = inlined_call_operand.vmem [shape: f32[64,32], index: 1, kind: input, shape index: {}]
  %s2 = inlined_call_operand.vmem [shape: f32[300,32], index: 2, kind: output, shape index: {}]
  %s3 = sld [smem:[#allocation0]]
  $region41: #{node_apply.1} parent=0
    _
  %s5 = ssub.s32 1, %s3
  %s6 = scalar_select 0, %s5, %s3
  loop: start=0, step=1, limit=4
  $region2: #{node_apply.1} parent=0 // loop_pre_header
    _
  $region3: #{node_apply.1} parent=0 // loop_header
    %s8 = sphi 0, %s12
    %p9 = scmp.ge.s32.totalorder %s8, 4
    %s18 = sphi 0, %s20
    %s21 = sphi 0, %s18
    %s22 = sphi 0, %s21
    %s38 = sphi 0, %s22
    %s42 = sphi 0, %s42
    %s44 = sphi 0, %s42
    %s45 = sphi 0, %s44
    %s59 = sphi 0, %s45
    %s65 = sphi 0, %s67
    %s68 = sphi 0, %s65
    %s69 = sphi 0, %s68
    %s85 = sphi 0, %s69
  $region4: #{node_apply.1} parent=0 // loop_header_branch
    %11 = sbr.rel (%p9) target = $region8
  $region5: #{node_apply.1} parent=0 // loop_body
    %s13 = ssub.s32 %s8, 1
    %s14 = ssub.s32 %s8, 2
    %s15 = sadd.s32 %s8, 1
    %s16 = ssub.s32 %s8, %s15
    %p17 = scmp.eq.s32.totalorder %s16, 0
    %s19 = sadd.s32 %s18, 1
    %s20 = scalar_select %p17, %s18, %s19
    %p23 = pneg %p17
    %p24 = scmp.eq.s32.totalorder %s8, 1
    %p25 = por %p23, %p24
    %p26 = scmp.ne.s32.totalorder %s18, %s21
    %p27 = scmp.eq.s32.totalorder %s8, 0
    %p28 = por %p26, %p27
    %p29 = scmp.ne.s32.totalorder %s18, %s21
    %p30 = scmp.eq.s32.totalorder %s13, 1
    %p31 = por %p29, %p30
    %p32 = scmp.ne.s32.totalorder %s21, %s22
    %p33 = scmp.eq.s32.totalorder %s13, 0
    %p34 = por %p32, %p33
    %p35 = scmp.ne.s32.totalorder %s21, %s22
    %p36 = scmp.eq.s32.totalorder %s14, 1
    %p37 = por %p35, %p36
    %p39 = scmp.ne.s32.totalorder %s22, %s38
    %p40 = scmp.eq.s32.totalorder %s14, 0
    %p41 = por %p39, %p40
    %s43 = sadd.s32 %s42, 1
    %p46 = scmp.eq.s32.totalorder %s8, 1
    %p47 = scmp.ne.s32.totalorder %s42, %s44
    %p48 = scmp.eq.s32.totalorder %s8, 0
    %p49 = por %p47, %p48
    %p50 = scmp.ne.s32.totalorder %s42, %s44
    %p51 = scmp.eq.s32.totalorder %s13, 1
    %p52 = por %p50, %p51
    %p53 = scmp.ne.s32.totalorder %s44, %s45
    %p54 = scmp.eq.s32.totalorder %s13, 0
    %p55 = por %p53, %p54
    %p56 = scmp.ne.s32.totalorder %s44, %s45
    %p57 = scmp.eq.s32.totalorder %s14, 1
    %p58 = por %p56, %p57
    %p60 = scmp.ne.s32.totalorder %s45, %s59
    %p61 = scmp.eq.s32.totalorder %s14, 0
    %p62 = por %p60, %p61
    %s63 = ssub.s32 %s8, %s15
    %p64 = scmp.eq.s32.totalorder %s63, 0
    %s66 = sadd.s32 %s65, 1
    %s67 = scalar_select %p64, %s65, %s66
    %p70 = pneg %p64
    %p71 = scmp.eq.s32.totalorder %s8, 1
    %p72 = por %p70, %p71
    %p73 = scmp.ne.s32.totalorder %s65, %s68
    %p74 = scmp.eq.s32.totalorder %s8, 0
    %p75 = por %p73, %p74
    %p76 = scmp.ne.s32.totalorder %s65, %s68
    %p77 = scmp.eq.s32.totalorder %s13, 1
    %p78 = por %p76, %p77
    %p79 = scmp.ne.s32.totalorder %s68, %s69
    %p80 = scmp.eq.s32.totalorder %s13, 0
    %p81 = por %p79, %p80
    %p82 = scmp.ne.s32.totalorder %s68, %s69
    %p83 = scmp.eq.s32.totalorder %s14, 1
    %p84 = por %p82, %p83
    %p86 = scmp.ne.s32.totalorder %s69, %s85
    %p87 = scmp.eq.s32.totalorder %s14, 0
    %p88 = por %p86, %p87
    %p89 = scmp.le.s32.totalorder 1, %s8
    %p90 = scmp.lt.s32.totalorder %s8, 3
    %p91 = pnand %p89, %p90
    %p92 = pneg %p91
    // Predicated region
    $region9: #{node_apply.1} parent=5 // pred_check
      _
    $region10: #{node_apply.1} parent=5 // pred_check_branch
      %94 = sbr.rel (%p91) target = $region12
    $region11: #{node_apply.1} parent=5 // pred_region
      %s95 = ssub.s32 %s8, 1
      // Predicated region
      $region13: #{node_apply.1} parent=11 // pred_check
        %p96 = pneg %p55
      $region14: #{node_apply.1} parent=11 // pred_check_branch
        %98 = sbr.rel (%p96) target = $region16
      $region15: #{node_apply.1} parent=11 // pred_region
        _
      $region16: #{node_apply.1} parent=11 // pred_fallthru
        _
    $region12: #{node_apply.1} parent=5 // pred_fallthru
      _
    %p99 = scmp.lt.s32.totalorder %s8, 2
    // Predicated region
    $region17: #{node_apply.1} parent=5 // pred_check
      %p100 = pneg %p99
    $region18: #{node_apply.1} parent=5 // pred_check_branch
      %102 = sbr.rel (%p100) target = $region20
    $region19: #{node_apply.1} parent=5 // pred_region
      // Predicated region
      $region21: #{node_apply.1} parent=19 // pred_check
        %p103 = pneg %p28
      $region22: #{node_apply.1} parent=19 // pred_check_branch
        %105 = sbr.rel (%p103) target = $region24
      $region23: #{node_apply.1} parent=19 // pred_region
        %s106 = smul.u32 19, %s8
        %p107 = scmp.lt.s32.totalorder %s106, 37
        %s108 = scalar_select %p107, %s106, 37
        %s109 = smul.addr %s108, 8
        %s110 = scalar_lea.vmem %s0, %s109
        %s111 = smul.u32 19, %s8
      $region24: #{node_apply.1} parent=19 // pred_fallthru
        _
    $region20: #{node_apply.1} parent=5 // pred_fallthru
      _
    %p112 = scmp.le.s32.totalorder 1, %s8
    %p113 = scmp.lt.s32.totalorder %s8, 3
    %p114 = pnand %p112, %p113
    %p115 = pneg %p114
    // Predicated region
    $region25: #{node_apply.1} parent=5 // pred_check
      _
    $region26: #{node_apply.1} parent=5 // pred_check_branch
      %117 = sbr.rel (%p114) target = $region28
    $region27: #{node_apply.1} parent=5 // pred_region
      %s118 = ssub.s32 %s8, 1
      %s119 = smul.u32 19, %s13
      %p120 = scmp.lt.s32.totalorder %s119, 37
      %s121 = scalar_select %p120, %s119, 37
      %s122 = smul.addr %s121, 8
      %s123 = scalar_lea.vmem %s0, %s122
      %p124 = pneg %p34
      %p125 = pneg %p31
      %p126 = pneg %p55
      %p127 = pneg %p52
      %p128 = pneg %p81
      %p129 = pneg %p78
      %s130 = smul.u32 19, %s13
      %p131 = scmp.lt.s32.totalorder %s130, 37
      %s132 = scalar_select %p131, %s130, 37
      %s133 = smul.addr %s132, 8
      %s134 = scalar_lea.vmem %s2, %s133
      %s135 = smul.u32 19, %s13
      %p136 = scmp.lt.s32.totalorder %s135, 37
      %s137 = scalar_select %p136, %s135, 37
      %s138 = smul.addr %s137, 8
      %s139 = scalar_lea.vmem %s0, %s138
      %s140 = smul.u32 19, %s13
      %s141 = smul.u32 19, %s13
      %p142 = scmp.lt.s32.totalorder %s141, 37
      %s143 = scalar_select %p142, %s141, 37
      %s144 = smul.addr %s143, 8
      %s145 = scalar_lea.vmem %s2, %s144
      %s146 = smul.u32 19, %s13
      %v147 = vld [vmem:[%s139] sm:$0xff]
      %v148 = vld [vmem:[%s139 + $0x8] sm:$0xff]
      %v149 = vld [vmem:[%s139 + $0x10] sm:$0xff]
      %v150 = vld [vmem:[%s139 + $0x18] sm:$0xff]
      %v151 = vld [vmem:[%s139 + $0x20] sm:$0xff]
      %v152 = vld [vmem:[%s139 + $0x28] sm:$0xff]
      %v153 = vld [vmem:[%s139 + $0x30] sm:$0xff]
      %v154 = vld [vmem:[%s139 + $0x38] sm:$0xff]
      %v155 = vld [vmem:[%s139 + $0x40] sm:$0xff]
      %v156 = vld [vmem:[%s139 + $0x48] sm:$0xff]
      %v157 = vld [vmem:[%s139 + $0x50] sm:$0xff]
      %v158 = vld [vmem:[%s139 + $0x58] sm:$0xff]
      %v159 = vld [vmem:[%s139 + $0x60] sm:$0xff]
      %v160 = vld [vmem:[%s139 + $0x68] sm:$0xff]
      %v161 = vld [vmem:[%s139 + $0x70] sm:$0xff]
      %v162 = vld [vmem:[%s139 + $0x78] sm:$0xff]
      %v163 = vld [vmem:[%s139 + $0x80] sm:$0xff]
      %v164 = vld [vmem:[%s139 + $0x88] sm:$0xff]
      %v165 = vld [vmem:[%s139 + $0x90] sm:$0xff]
      %v166 = vld [vmem:[%s1] sm:$0xff]
      %v167 = vld [vmem:[%s1 + $0x8] sm:$0xff]
      %v168 = vld [vmem:[%s1 + $0x10] sm:$0xff]
      %v169 = vld [vmem:[%s1 + $0x18] sm:$0xff]
      %v170 = vld [vmem:[%s1 + $0x20] sm:$0xff]
      %v171 = vld [vmem:[%s1 + $0x28] sm:$0xff]
      %v172 = vld [vmem:[%s1 + $0x30] sm:$0xff]
      %v173 = vld [vmem:[%s1 + $0x38] sm:$0xff]
      %vm174 = vcmask 523264
      %v176 = vsel %vm174, %v147, 0
      %v179 = vsel %vm174, %v148, 0
      %v182 = vsel %vm174, %v149, 0
      %v185 = vsel %vm174, %v150, 0
      %v188 = vsel %vm174, %v151, 0
      %v191 = vsel %vm174, %v152, 0
      %v194 = vsel %vm174, %v153, 0
      %v197 = vsel %vm174, %v154, 0
      %v200 = vsel %vm174, %v155, 0
      %v203 = vsel %vm174, %v156, 0
      %v206 = vsel %vm174, %v157, 0
      %v209 = vsel %vm174, %v158, 0
      %v212 = vsel %vm174, %v159, 0
      %v215 = vsel %vm174, %v160, 0
      %v218 = vsel %vm174, %v161, 0
      %v221 = vsel %vm174, %v162, 0
      %v224 = vsel %vm174, %v163, 0
      %v227 = vsel %vm174, %v164, 0
      %v230 = vsel %vm174, %v165, 0
      %232 = vmatprep.subr.mxu0 0.0
      %233 = vmatpush1.msra.mxu0 0.0
      %234 = vmatprep.subr.mxu0 0.0
      %235 = vmatpush1.msra.mxu0 0.0
      %236 = vmatprep.subr.mxu0 0.0
      %237 = vmatpush1.msra.mxu0 0.0
      %238 = vmatprep.subr.mxu0 0.0
      %239 = vmatpush1.msra.mxu0 0.0
      %240 = vmatprep.subr.mxu0 0.0
      %241 = vmatpush1.msra.mxu0 0.0
      %242 = vmatprep.subr.mxu0 0.0
      %243 = vmatpush1.msra.mxu0 0.0
      %244 = vmatprep.subr.mxu0 0.0
      %245 = vmatpush1.msra.mxu0 0.0
      %246 = vmatprep.subr.mxu0 0.0
      %247 = vmatpush1.msra.mxu0 0.0
      %248 = vmatprep.subr.mxu0 0.0
      %249 = vmatpush1.msra.mxu0 %v173
      %250 = vmatprep.subr.mxu0 0.0
      %251 = vmatpush1.msra.mxu0 %v172
      %252 = vmatprep.subr.mxu0 0.0
      %253 = vmatpush1.msra.mxu0 %v171
      %254 = vmatprep.subr.mxu0 0.0
      %255 = vmatpush1.msra.mxu0 %v170
      %256 = vmatprep.subr.mxu0 0.0
      %257 = vmatpush1.msra.mxu0 %v169
      %258 = vmatprep.subr.mxu0 0.0
      %259 = vmatpush1.msra.mxu0 %v168
      %260 = vmatprep.subr.mxu0 0.0
      %261 = vmatpush1.msra.mxu0 %v167
      %262 = vmatprep.subr.mxu0 0.0
      %263 = vmatpush1.msra.mxu0 %v166
      %264 = vmatprep.subr.mxu0 0.0
      %265 = vmatpush2.msra.mxu0 0.0
      %266 = vmatprep.subr.mxu0 0.0
      %267 = vmatpush2.msra.mxu0 0.0
      %268 = vmatprep.subr.mxu0 0.0
      %269 = vmatpush2.msra.mxu0 0.0
      %270 = vmatprep.subr.mxu0 0.0
      %271 = vmatpush2.msra.mxu0 0.0
      %272 = vmatprep.subr.mxu0 0.0
      %273 = vmatpush2.msra.mxu0 0.0
      %274 = vmatprep.subr.mxu0 0.0
      %275 = vmatpush2.msra.mxu0 0.0
      %276 = vmatprep.subr.mxu0 0.0
      %277 = vmatpush2.msra.mxu0 0.0
      %278 = vmatprep.subr.mxu0 0.0
      %279 = vmatpush2.msra.mxu0 0.0
      %280 = vmatprep.subr.mxu0 0.0
      %281 = vmatpush2.msra.mxu0 0.0
      %282 = vmatprep.subr.mxu0 0.0
      %283 = vmatpush2.msra.mxu0 0.0
      %284 = vmatprep.subr.mxu0 0.0
      %285 = vmatpush2.msra.mxu0 0.0
      %286 = vmatprep.subr.mxu0 0.0
      %287 = vmatpush2.msra.mxu0 0.0
      %288 = vmatprep.subr.mxu0 0.0
      %289 = vmatpush2.msra.mxu0 0.0
      %290 = vmatprep.subr.mxu0 0.0
      %291 = vmatpush2.msra.mxu0 0.0
      %292 = vmatprep.subr.mxu0 0.0
      %293 = vmatpush2.msra.mxu0 0.0
      %294 = vmatprep.subr.mxu0 0.0
      %295 = vmatpush2.msra.mxu0 0.0
      %296 = vmatprep.mubr.f32.mxu0 0.0
      %297 = vmatmul.mubr.f32.gmra.mxu0 %v176
      %v298 = vpop.f32.mrf.mxu0
      %v299 = vadd.f32 0.0, %v298
      %v300 = vpop.f32.mrf.mxu0
      %301 = vmatprep.mubr.f32.mxu0 0.0
      %302 = vmatmul.mubr.f32.gmra.mxu0 %v179
      %v303 = vpop.f32.mrf.mxu0
      %v304 = vadd.f32 0.0, %v303
      %v305 = vpop.f32.mrf.mxu0
      %306 = vmatprep.mubr.f32.mxu0 0.0
      %307 = vmatmul.mubr.f32.gmra.mxu0 %v182
      %v308 = vpop.f32.mrf.mxu0
      %v309 = vadd.f32 0.0, %v308
      %v310 = vpop.f32.mrf.mxu0
      %311 = vmatprep.mubr.f32.mxu0 0.0
      %312 = vmatmul.mubr.f32.gmra.mxu0 %v185
      %v313 = vpop.f32.mrf.mxu0
      %v314 = vadd.f32 0.0, %v313
      %v315 = vpop.f32.mrf.mxu0
      %316 = vmatprep.mubr.f32.mxu0 0.0
      %317 = vmatmul.mubr.f32.gmra.mxu0 %v188
      %v318 = vpop.f32.mrf.mxu0
      %v319 = vadd.f32 0.0, %v318
      %v320 = vpop.f32.mrf.mxu0
      %321 = vmatprep.mubr.f32.mxu0 0.0
      %322 = vmatmul.mubr.f32.gmra.mxu0 %v191
      %v323 = vpop.f32.mrf.mxu0
      %v324 = vadd.f32 0.0, %v323
      %v325 = vpop.f32.mrf.mxu0
      %326 = vmatprep.mubr.f32.mxu0 0.0
      %327 = vmatmul.mubr.f32.gmra.mxu0 %v194
      %v328 = vpop.f32.mrf.mxu0
      %v329 = vadd.f32 0.0, %v328
      %v330 = vpop.f32.mrf.mxu0
      %331 = vmatprep.mubr.f32.mxu0 0.0
      %332 = vmatmul.mubr.f32.gmra.mxu0 %v197
      %v333 = vpop.f32.mrf.mxu0
      %v334 = vadd.f32 0.0, %v333
      %v335 = vpop.f32.mrf.mxu0
      %336 = vmatprep.mubr.f32.mxu0 0.0
      %337 = vmatmul.mubr.f32.gmra.mxu0 %v200
      %v338 = vpop.f32.mrf.mxu0
      %v339 = vadd.f32 0.0, %v338
      %v340 = vpop.f32.mrf.mxu0
      %341 = vmatprep.mubr.f32.mxu0 0.0
      %342 = vmatmul.mubr.f32.gmra.mxu0 %v203
      %v343 = vpop.f32.mrf.mxu0
      %v344 = vadd.f32 0.0, %v343
      %v345 = vpop.f32.mrf.mxu0
      %346 = vmatprep.mubr.f32.mxu0 0.0
      %347 = vmatmul.mubr.f32.gmra.mxu0 %v206
      %v348 = vpop.f32.mrf.mxu0
      %v349 = vadd.f32 0.0, %v348
      %v350 = vpop.f32.mrf.mxu0
      %351 = vmatprep.mubr.f32.mxu0 0.0
      %352 = vmatmul.mubr.f32.gmra.mxu0 %v209
      %v353 = vpop.f32.mrf.mxu0
      %v354 = vadd.f32 0.0, %v353
      %v355 = vpop.f32.mrf.mxu0
      %356 = vmatprep.mubr.f32.mxu0 0.0
      %357 = vmatmul.mubr.f32.gmra.mxu0 %v212
      %v358 = vpop.f32.mrf.mxu0
      %v359 = vadd.f32 0.0, %v358
      %v360 = vpop.f32.mrf.mxu0
      %361 = vmatprep.mubr.f32.mxu0 0.0
      %362 = vmatmul.mubr.f32.gmra.mxu0 %v215
      %v363 = vpop.f32.mrf.mxu0
      %v364 = vadd.f32 0.0, %v363
      %v365 = vpop.f32.mrf.mxu0
      %366 = vmatprep.mubr.f32.mxu0 0.0
      %367 = vmatmul.mubr.f32.gmra.mxu0 %v218
      %v368 = vpop.f32.mrf.mxu0
      %v369 = vadd.f32 0.0, %v368
      %v370 = vpop.f32.mrf.mxu0
      %371 = vmatprep.mubr.f32.mxu0 0.0
      %372 = vmatmul.mubr.f32.gmra.mxu0 %v221
      %v373 = vpop.f32.mrf.mxu0
      %v374 = vadd.f32 0.0, %v373
      %v375 = vpop.f32.mrf.mxu0
      %376 = vmatprep.mubr.f32.mxu0 0.0
      %377 = vmatmul.mubr.f32.gmra.mxu0 %v224
      %v378 = vpop.f32.mrf.mxu0
      %v379 = vadd.f32 0.0, %v378
      %v380 = vpop.f32.mrf.mxu0
      %381 = vmatprep.mubr.f32.mxu0 0.0
      %382 = vmatmul.mubr.f32.gmra.mxu0 %v227
      %v383 = vpop.f32.mrf.mxu0
      %v384 = vadd.f32 0.0, %v383
      %v385 = vpop.f32.mrf.mxu0
      %386 = vmatprep.mubr.f32.mxu0 0.0
      %387 = vmatmul.mubr.f32.gmra.mxu0 %v230
      %v388 = vpop.f32.mrf.mxu0
      %v389 = vadd.f32 0.0, %v388
      %v390 = vpop.f32.mrf.mxu0
      %391 = vdwg.mxu0
      %vm392 = vcmask 261120
      %393 = vst.msk [vmem:[%s145] sm:$0xff] %vm392, %v299
      %394 = vst.msk [vmem:[%s145 + $0x8] sm:$0xff] %vm392, %v304
      %395 = vst.msk [vmem:[%s145 + $0x10] sm:$0xff] %vm392, %v309
      %396 = vst.msk [vmem:[%s145 + $0x18] sm:$0xff] %vm392, %v314
      %397 = vst.msk [vmem:[%s145 + $0x20] sm:$0xff] %vm392, %v319
      %398 = vst.msk [vmem:[%s145 + $0x28] sm:$0xff] %vm392, %v324
      %399 = vst.msk [vmem:[%s145 + $0x30] sm:$0xff] %vm392, %v329
      %400 = vst.msk [vmem:[%s145 + $0x38] sm:$0xff] %vm392, %v334
      %401 = vst.msk [vmem:[%s145 + $0x40] sm:$0xff] %vm392, %v339
      %402 = vst.msk [vmem:[%s145 + $0x48] sm:$0xff] %vm392, %v344
      %403 = vst.msk [vmem:[%s145 + $0x50] sm:$0xff] %vm392, %v349
      %404 = vst.msk [vmem:[%s145 + $0x58] sm:$0xff] %vm392, %v354
      %405 = vst.msk [vmem:[%s145 + $0x60] sm:$0xff] %vm392, %v359
      %406 = vst.msk [vmem:[%s145 + $0x68] sm:$0xff] %vm392, %v364
      %407 = vst.msk [vmem:[%s145 + $0x70] sm:$0xff] %vm392, %v369
      %408 = vst.msk [vmem:[%s145 + $0x78] sm:$0xff] %vm392, %v374
      %409 = vst.msk [vmem:[%s145 + $0x80] sm:$0xff] %vm392, %v379
      %410 = vst.msk [vmem:[%s145 + $0x88] sm:$0xff] %vm392, %v384
      %411 = vst.msk [vmem:[%s145 + $0x90] sm:$0xff] %vm392, %v389
      %s412 = smul.u32 19, %s13
      %p413 = scmp.lt.s32.totalorder %s412, 37
      %s414 = scalar_select %p413, %s412, 37
      %s415 = smul.addr %s414, 8
      %s416 = scalar_lea.vmem %s2, %s415
      // Predicated region
      $region29: #{node_apply.1} parent=27 // pred_check
        %p417 = pneg %p78
      $region30: #{node_apply.1} parent=27 // pred_check_branch
        %419 = sbr.rel (%p417) target = $region32
      $region31: #{node_apply.1} parent=27 // pred_region
        %s420 = smul.u32 19, %s13
      $region32: #{node_apply.1} parent=27 // pred_fallthru
        _
    $region28: #{node_apply.1} parent=5 // pred_fallthru
      _
    %p421 = scmp.le.s32.totalorder 2, %s8
    // Predicated region
    $region33: #{node_apply.1} parent=5 // pred_check
      %p422 = pneg %p421
    $region34: #{node_apply.1} parent=5 // pred_check_branch
      %424 = sbr.rel (%p422) target = $region36
    $region35: #{node_apply.1} parent=5 // pred_region
      %s425 = ssub.s32 %s8, 2
      // Predicated region
      $region37: #{node_apply.1} parent=35 // pred_check
        %p426 = pneg %p84
      $region38: #{node_apply.1} parent=35 // pred_check_branch
        %428 = sbr.rel (%p426) target = $region40
      $region39: #{node_apply.1} parent=35 // pred_region
        %s429 = smul.u32 19, %s14
        %p430 = scmp.lt.s32.totalorder %s429, 37
        %s431 = scalar_select %p430, %s429, 37
        %s432 = smul.addr %s431, 8
        %s433 = scalar_lea.vmem %s2, %s432
      $region40: #{node_apply.1} parent=35 // pred_fallthru
        _
    $region36: #{node_apply.1} parent=5 // pred_fallthru
      _
  $region6: #{node_apply.1} parent=0 // loop_footer
    %s12 = sadd.s32 1, %s8
  $region7: #{node_apply.1} parent=0 // loop_footer_branch
    %7 = sbr.rel target = $region3
  $region8: #{node_apply.1} parent=0 // loop_exit
    _

</llo_original>
